<compile_context>
chip_gen: v7x
topology: tpu7x:2x2x1
jax: 0.10.0
libtpu: 0.0.40
codegen_flags: <defaults>
</compile_context>

<pallas_src>
import jax
import jax.numpy as jnp
from jax.experimental import pallas as pl
from jax.experimental.pallas import tpu as pltpu


# ---------------------------------------------------------------------------
# Kernel
# ---------------------------------------------------------------------------
def _make_decode_kernel(num_classes, anchors, feat_w, stride_w, stride_h,
                        k_sample, lane_tile, transpose_out):
    nc5 = 5 + num_classes
    A = len(anchors)
    sw, sh = float(stride_w), float(stride_h)
    w_f = float(feat_w)
    inv_w = 1.0 / w_f
    if k_sample == 0:
        cx_mul, cx_add = 1.05 * sw, -0.025 * sw
        cy_mul, cy_add = 1.05 * sh, -0.025 * sh
    else:
        cx_mul, cx_add = sw, 0.0
        cy_mul, cy_add = sh, 0.0
    # Original (pixel-space) anchors: exp(tw) * (aw/sw) * sw == exp(tw)*aw, so
    # the stride scaling is folded away at trace time.  Static config ->
    # compile-time constants, no scalar prefetch needed.
    anchor_w = [float(a[0]) for a in anchors]
    anchor_h = [float(a[1]) for a in anchors]

    def kernel(pred_ref, out_ref):
        lt = pl.program_id(1)

        # Per-lane grid coordinates for this lane tile, via exact f32
        # floor-division (no vector int div/mod); exact for L < 2^23.
        lin = lt * lane_tile + jax.lax.broadcasted_iota(
            jnp.int32, (1, lane_tile), 1)                          # (1, tL)
        linf = lin.astype(jnp.float32)
        gy = jnp.floor((linf + 0.5) * inv_w)
        gx = linf - gy * w_f
        add_x = gx * sw + cx_add                                   # (1, tL)
        add_y = gy * sh + cy_add                                   # (1, tL)

        # Row machinery for the 4 box rows (hoisted out of the anchor loop).
        row4 = jax.lax.broadcasted_iota(jnp.int32, (4, 1), 0)      # (4, 1)
        add04 = jnp.where(row4 == 0, add_x,
                jnp.where(row4 == 1, add_y, 0.0))                  # (4, tL)

        for a in range(A):                       # A is tiny & static (typ. 3)
            p = pred_ref[a].astype(jnp.float32)                    # (nc5, tL)
            s = jax.nn.sigmoid(p)                # single full-tile EUP pass

            if not transpose_out:
                # Dense full-tile store first, so the bulk of s / p dies early
                # (only rows 0:4 stay live for the box patch below).
                out_ref[a] = s

            # Box math restricted to rows 0..3.
            p04 = p[0:4, :]                                        # (4, tL)
            if k_sample == 0:
                base04 = jnp.where(row4 < 2, s[0:4, :], jnp.exp(p04))
            else:
                base04 = jnp.where(row4 < 2, jnp.tanh(p04), jnp.exp(p04))
            mul04 = jnp.where(row4 == 0, cx_mul,
                    jnp.where(row4 == 1, cy_mul,
                    jnp.where(row4 == 2, anchor_w[a], anchor_h[a])))  # (4, 1)
            box = base04 * mul04 + add04                           # (4, tL)

            if transpose_out:
                # Assemble the full tile channel-major (cheap sublane concat),
                # transpose once on the XLU and store in PyTorch layout.
                full = jnp.concatenate([box, s[4:, :]], axis=0)    # (nc5, tL)
                out_ref[a] = full.T                                # (tL, nc5)
            else:
                out_ref[a, 0:4, :] = box         # patch the 4 box rows

    return kernel


# ---------------------------------------------------------------------------
# Tiling helper
# ---------------------------------------------------------------------------
def _pick_lane_tile(L, bytes_per_lane, max_block_bytes=8 << 20):
    """Lane-tile length: as large as the VMEM budget allows (multiple of 128),
    or the full extent L.  Ragged last block is allowed (OOB writes are
    masked, OOB reads only feed lanes that get discarded)."""
    if L * bytes_per_lane <= max_block_bytes:
        return L
    tl = max(128, (max_block_bytes // bytes_per_lane) // 128 * 128)
    return min(tl, ((L + 127) // 128) * 128)


# ---------------------------------------------------------------------------
# Per-layer decode
# ---------------------------------------------------------------------------
def _decode_one_layer(x, anchors, num_classes, img_size, k_sample=0):
    """x: (B, A*(5+C), H, W) feature map. Returns (B, A*H*W, 5+C) float32."""
    B, C_in, H, W = x.shape
    A = len(anchors)
    nc5 = 5 + num_classes
    assert C_in == A * nc5
    stride_h = img_size[1] / H
    stride_w = img_size[0] / W
    L = H * W

    # Channel-major view: pure reshape, no transpose / HBM copy.
    pred_cm = x.reshape(B * A, nc5, L)

    in_bytes = jnp.dtype(x.dtype).itemsize
    # Budget counts both the input block and the f32 output block (each is
    # double-buffered by the pipeline).
    tl = _pick_lane_tile(L, A * nc5 * (in_bytes + 4))
    n_lt = pl.cdiv(L, tl)

    # Wide channel counts: transpose in-kernel and store PyTorch layout
    # directly (no post-kernel relayout pass).  Narrow channel counts: keep
    # the lane-dense channel-major store + one external relayout.
    transpose_out = nc5 >= 32

    kernel = _make_decode_kernel(num_classes, anchors, W, stride_w, stride_h,
                                 k_sample, tl, transpose_out)

    in_spec = pl.BlockSpec((A, nc5, tl), lambda b, l: (b, 0, l))
    if transpose_out:
        out_shape = jax.ShapeDtypeStruct((B * A, L, nc5), jnp.float32)
        out_spec = pl.BlockSpec((A, tl, nc5), lambda b, l: (b, l, 0))
    else:
        out_shape = jax.ShapeDtypeStruct((B * A, nc5, L), jnp.float32)
        out_spec = pl.BlockSpec((A, nc5, tl), lambda b, l: (b, 0, l))

    n_elem = B * A * nc5 * L
    cost = pl.CostEstimate(
        flops=6 * n_elem,
        transcendentals=B * A * L * (nc5 + (6 if k_sample else 2)),
        bytes_accessed=n_elem * (in_bytes + 4),
    )

    out = pl.pallas_call(
        kernel,
        out_shape=out_shape,
        grid=(B, n_lt),
        in_specs=[in_spec],
        out_specs=out_spec,
        compiler_params=pltpu.CompilerParams(
            dimension_semantics=("parallel", "parallel"),
            vmem_limit_bytes=32 * 1024 * 1024,   # generation-safe (v5e..v7x)
        ),
        cost_estimate=cost,
    )(pred_cm)

    if transpose_out:
        # Pure reshape -- no extra HBM pass.
        return out.reshape(B, A * L, nc5)
    # Narrow-nc5 path: single external relayout of a small output.
    return out.reshape(B, A, nc5, L).transpose(0, 1, 3, 2).reshape(B, A * L, nc5)


def decode_box_forward(inputs, anchors, num_classes, img_size, k_sample=0):
    """Equivalent of DecodeBox.forward: list of feature maps ->
    (B, sum_i A*H_i*W_i, 5+C)."""
    outputs = []
    for layer, x in enumerate(inputs):
        outputs.append(
            _decode_one_layer(x, anchors[layer], num_classes, img_size, k_sample)
        )
    # TODO(synk): fuse the cross-layer concat by writing each layer directly
    # into its row-slice of a preallocated output (input_output_aliases);
    # blocked today by row-base / block-size alignment across layers.
    return jnp.concatenate(outputs, axis=1)


# ---------------------------------------------------------------------------
# Pure-JAX reference (mirrors the PyTorch math) for correctness checks.
# ---------------------------------------------------------------------------
def _decode_one_layer_ref(x, anchors, num_classes, img_size, k_sample=0):
    B, C_in, H, W = x.shape
    A = len(anchors)
    nc5 = 5 + num_classes
    stride_h = img_size[1] / H
    stride_w = img_size[0] / W
    pred = jnp.transpose(x.reshape(B, A, nc5, H, W), (0, 1, 3, 4, 2))
    if k_sample == 0:
        px = jax.nn.sigmoid(pred[..., 0])
        py = jax.nn.sigmoid(pred[..., 1])
    else:
        px = jnp.tanh(pred[..., 0])
        py = jnp.tanh(pred[..., 1])
    pw, ph = pred[..., 2], pred[..., 3]
    conf = jax.nn.sigmoid(pred[..., 4])
    cls = jax.nn.sigmoid(pred[..., 5:])
    gx = jnp.broadcast_to(jnp.arange(W, dtype=jnp.float32)[None, :], (H, W))
    gy = jnp.broadcast_to(jnp.arange(H, dtype=jnp.float32)[:, None], (H, W))
    gx = jnp.broadcast_to(gx[None, None], (B, A, H, W))
    gy = jnp.broadcast_to(gy[None, None], (B, A, H, W))
    aw = jnp.array([a[0] / stride_w for a in anchors], dtype=jnp.float32)
    ah = jnp.array([a[1] / stride_h for a in anchors], dtype=jnp.float32)
    aw = jnp.broadcast_to(aw[None, :, None, None], (B, A, H, W))
    ah = jnp.broadcast_to(ah[None, :, None, None], (B, A, H, W))
    if k_sample == 0:
        bx = px * 1.05 + gx - 0.025
        by = py * 1.05 + gy - 0.025
    else:
        bx = px + gx
        by = py + gy
    bw = jnp.exp(pw) * aw
    bh = jnp.exp(ph) * ah
    boxes = jnp.stack(
        [bx * stride_w, by * stride_h, bw * stride_w, bh * stride_h], axis=-1
    ).reshape(B, -1, 4)
    return jnp.concatenate(
        [boxes, conf.reshape(B, -1, 1), cls.reshape(B, -1, num_classes)], axis=-1
    )


if __name__ == "__main__":
    # Deterministic synthetic config (small, consistent with the module).
    B, A = 2, 3
    img_size = (64, 64)            # (img_w, img_h)

    key = jax.random.PRNGKey(0)
    k0, k1, k2 = jax.random.split(key, 3)

    # ---------------- narrow-nc5 path (channel-major store) ----------------
    num_classes = 3
    nc5 = 5 + num_classes          # 8
    anchors = [
        [(10.0, 13.0), (16.0, 30.0), (33.0, 23.0)],   # layer 0 (stride 8)
        [(30.0, 61.0), (62.0, 45.0), (59.0, 119.0)],  # layer 1 (stride 16)
    ]
    x0 = jax.random.normal(k0, (B, A * nc5, 8, 8), dtype=jnp.float32)
    x1 = jax.random.normal(k1, (B, A * nc5, 4, 4), dtype=jnp.float32)
    inputs = [x0, x1]

    out = jax.block_until_ready(
        decode_box_forward(inputs, anchors, num_classes, img_size, 0))
    ref = jnp.concatenate(
        [_decode_one_layer_ref(x0, anchors[0], num_classes, img_size, 0),
         _decode_one_layer_ref(x1, anchors[1], num_classes, img_size, 0)], axis=1)
    assert out.shape == (B, A * (8 * 8 + 4 * 4), nc5), out.shape
    assert jnp.allclose(out, ref, atol=1e-5, rtol=1e-5), "mismatch (narrow, k=0)"

    out1 = jax.block_until_ready(
        decode_box_forward(inputs, anchors, num_classes, img_size, 1))
    ref1 = jnp.concatenate(
        [_decode_one_layer_ref(x0, anchors[0], num_classes, img_size, 1),
         _decode_one_layer_ref(x1, anchors[1], num_classes, img_size, 1)], axis=1)
    assert jnp.allclose(out1, ref1, atol=1e-5, rtol=1e-5), "mismatch (narrow, k=1)"

    # ------- wide-nc5 path (in-kernel transpose, PyTorch-layout store) ------
    num_classes_w = 27             # nc5 = 32 -> transpose-in-kernel path
    nc5_w = 5 + num_classes_w
    anchors_w = [[(10.0, 13.0), (16.0, 30.0), (33.0, 23.0)]]
    xw = jax.random.normal(k2, (B, A * nc5_w, 16, 16), dtype=jnp.float32)

    out_w = jax.block_until_ready(
        decode_box_forward([xw], anchors_w, num_classes_w, img_size, 0))
    ref_w = _decode_one_layer_ref(xw, anchors_w[0], num_classes_w, img_size, 0)
    assert out_w.shape == (B, A * 16 * 16, nc5_w), out_w.shape
    assert jnp.allclose(out_w, ref_w, atol=1e-5, rtol=1e-5), "mismatch (wide, k=0)"

    out_w1 = jax.block_until_ready(
        decode_box_forward([xw], anchors_w, num_classes_w, img_size, 1))
    ref_w1 = _decode_one_layer_ref(xw, anchors_w[0], num_classes_w, img_size, 1)
    assert jnp.allclose(out_w1, ref_w1, atol=1e-5, rtol=1e-5), "mismatch (wide, k=1)"

    print("KERNEL_OK")
</pallas_src>

<mosaic_0001>
module attributes {stable_mosaic.version = 11 : i64} {
  func.func @kernel(%arg0: i32, %arg1: i32, %arg2: memref<3x8x64xf32, #tpu.memory_space<vmem>>, %arg3: memref<3x8x64xf32, #tpu.memory_space<vmem>>) attributes {dimension_semantics = [#tpu.dimension_semantics<parallel>, #tpu.dimension_semantics<parallel>], iteration_bounds = array<i64: 2, 1>, scalar_prefetch = 0 : i64, scratch_operands = 0 : i64, tpu.core_type = #tpu.core_type<tc>, window_params = [{transform_indices = @transform_0, window_bounds = array<i64: 3, 8, 64>}, {transform_indices = @transform_1, window_bounds = array<i64: 3, 8, 64>}]} {
    %c64_i32 = arith.constant 64 : i32
    %0 = arith.muli %arg1, %c64_i32 : i32
    %1 = tpu.iota {dimensions = array<i32: 1>} : vector<1x64xi32>
    %2 = vector.broadcast %0 : i32 to vector<1x64xi32>
    %3 = arith.addi %2, %1 : vector<1x64xi32>
    %4 = arith.sitofp %3 : vector<1x64xi32> to vector<1x64xf32>
    %cst = arith.constant 5.000000e-01 : f32
    %5 = vector.broadcast %cst : f32 to vector<1x64xf32>
    %6 = arith.addf %4, %5 : vector<1x64xf32>
    %cst_0 = arith.constant 1.250000e-01 : f32
    %7 = vector.broadcast %cst_0 : f32 to vector<1x64xf32>
    %8 = arith.mulf %6, %7 : vector<1x64xf32>
    %9 = math.floor %8 : vector<1x64xf32>
    %cst_1 = arith.constant 8.000000e+00 : f32
    %10 = vector.broadcast %cst_1 : f32 to vector<1x64xf32>
    %11 = arith.mulf %9, %10 : vector<1x64xf32>
    %12 = arith.subf %4, %11 : vector<1x64xf32>
    %cst_2 = arith.constant 8.000000e+00 : f32
    %13 = vector.broadcast %cst_2 : f32 to vector<1x64xf32>
    %14 = arith.mulf %12, %13 : vector<1x64xf32>
    %cst_3 = arith.constant -2.000000e-01 : f32
    %15 = vector.broadcast %cst_3 : f32 to vector<1x64xf32>
    %16 = arith.addf %14, %15 : vector<1x64xf32>
    %cst_4 = arith.constant 8.000000e+00 : f32
    %17 = vector.broadcast %cst_4 : f32 to vector<1x64xf32>
    %18 = arith.mulf %9, %17 : vector<1x64xf32>
    %cst_5 = arith.constant -2.000000e-01 : f32
    %19 = vector.broadcast %cst_5 : f32 to vector<1x64xf32>
    %20 = arith.addf %18, %19 : vector<1x64xf32>
    %21 = tpu.iota {dimensions = array<i32: 0>} : vector<4x1xi32>
    %c0_i32 = arith.constant 0 : i32
    %22 = vector.broadcast %c0_i32 : i32 to vector<4x1xi32>
    %23 = arith.cmpi eq, %21, %22 : vector<4x1xi32>
    %c1_i32 = arith.constant 1 : i32
    %24 = vector.broadcast %c1_i32 : i32 to vector<4x1xi32>
    %25 = arith.cmpi eq, %21, %24 : vector<4x1xi32>
    %cst_6 = arith.constant 0.000000e+00 : f32
    %26 = vector.shape_cast %25 : vector<4x1xi1> to vector<4x1xi1>
    %27 = vector.broadcast %26 : vector<4x1xi1> to vector<4x64xi1>
    %28 = vector.shape_cast %20 : vector<1x64xf32> to vector<1x64xf32>
    %29 = vector.broadcast %28 : vector<1x64xf32> to vector<4x64xf32>
    %30 = vector.broadcast %cst_6 : f32 to vector<4x64xf32>
    %31 = arith.select %27, %29, %30 : vector<4x64xi1>, vector<4x64xf32>
    %32 = vector.shape_cast %23 : vector<4x1xi1> to vector<4x1xi1>
    %33 = vector.broadcast %32 : vector<4x1xi1> to vector<4x64xi1>
    %34 = vector.shape_cast %16 : vector<1x64xf32> to vector<1x64xf32>
    %35 = vector.broadcast %34 : vector<1x64xf32> to vector<4x64xf32>
    %36 = arith.select %33, %35, %31 : vector<4x64xi1>, vector<4x64xf32>
    %c0 = arith.constant 0 : index
    %c0_7 = arith.constant 0 : index
    %c0_8 = arith.constant 0 : index
    %37 = vector.load %arg2[%c0, %c0_7, %c0_8] : memref<3x8x64xf32, #tpu.memory_space<vmem>>, vector<1x8x64xf32>
    %38 = vector.shape_cast %37 : vector<1x8x64xf32> to vector<8x64xf32>
    %39 = arith.negf %38 : vector<8x64xf32>
    %40 = math.exp %39 : vector<8x64xf32>
    %cst_9 = arith.constant 1.000000e+00 : f32
    %41 = vector.broadcast %cst_9 : f32 to vector<8x64xf32>
    %42 = arith.addf %41, %40 : vector<8x64xf32>
    %43 = arith.divf %41, %42 : vector<8x64xf32>
    %c0_10 = arith.constant 0 : index
    %c0_11 = arith.constant 0 : index
    %c0_12 = arith.constant 0 : index
    %44 = vector.load %arg3[%c0_10, %c0_11, %c0_12] : memref<3x8x64xf32, #tpu.memory_space<vmem>>, vector<1x8x64xf32>
    %45 = vector.shape_cast %44 : vector<1x8x64xf32> to vector<8x64xf32>
    %46 = vector.shape_cast %43 : vector<8x64xf32> to vector<1x8x64xf32>
    tpu.vector_store %arg3[%c0_10, %c0_11, %c0_12], %46 {strides = array<i32>} : memref<3x8x64xf32, #tpu.memory_space<vmem>>, vector<1x8x64xf32>,
    %47 = vector.extract_strided_slice %38 {offsets = [0, 0], sizes = [4, 64], strides = [1, 1]} : vector<8x64xf32> to vector<4x64xf32>
    %c2_i32 = arith.constant 2 : i32
    %48 = vector.broadcast %c2_i32 : i32 to vector<4x1xi32>
    %49 = arith.cmpi slt, %21, %48 : vector<4x1xi32>
    %50 = vector.extract_strided_slice %43 {offsets = [0, 0], sizes = [4, 64], strides = [1, 1]} : vector<8x64xf32> to vector<4x64xf32>
    %51 = math.exp %47 : vector<4x64xf32>
    %52 = vector.shape_cast %49 : vector<4x1xi1> to vector<4x1xi1>
    %53 = vector.broadcast %52 : vector<4x1xi1> to vector<4x64xi1>
    %54 = arith.select %53, %50, %51 : vector<4x64xi1>, vector<4x64xf32>
    %c0_i32_13 = arith.constant 0 : i32
    %55 = vector.broadcast %c0_i32_13 : i32 to vector<4x1xi32>
    %56 = arith.cmpi eq, %21, %55 : vector<4x1xi32>
    %c1_i32_14 = arith.constant 1 : i32
    %57 = vector.broadcast %c1_i32_14 : i32 to vector<4x1xi32>
    %58 = arith.cmpi eq, %21, %57 : vector<4x1xi32>
    %c2_i32_15 = arith.constant 2 : i32
    %59 = vector.broadcast %c2_i32_15 : i32 to vector<4x1xi32>
    %60 = arith.cmpi eq, %21, %59 : vector<4x1xi32>
    %cst_16 = arith.constant 1.000000e+01 : f32
    %cst_17 = arith.constant 1.300000e+01 : f32
    %61 = vector.broadcast %cst_16 : f32 to vector<4x1xf32>
    %62 = vector.broadcast %cst_17 : f32 to vector<4x1xf32>
    %63 = arith.select %60, %61, %62 : vector<4x1xi1>, vector<4x1xf32>
    %cst_18 = arith.constant 8.39999961 : f32
    %64 = vector.broadcast %cst_18 : f32 to vector<4x1xf32>
    %65 = arith.select %58, %64, %63 : vector<4x1xi1>, vector<4x1xf32>
    %cst_19 = arith.constant 8.39999961 : f32
    %66 = vector.broadcast %cst_19 : f32 to vector<4x1xf32>
    %67 = arith.select %56, %66, %65 : vector<4x1xi1>, vector<4x1xf32>
    %68 = vector.broadcast %67 : vector<4x1xf32> to vector<4x64xf32>
    %69 = arith.mulf %54, %68 : vector<4x64xf32>
    %70 = arith.addf %69, %36 : vector<4x64xf32>
    %c0_20 = arith.constant 0 : index
    %c0_21 = arith.constant 0 : index
    %c0_22 = arith.constant 0 : index
    %71 = vector.load %arg3[%c0_20, %c0_21, %c0_22] : memref<3x8x64xf32, #tpu.memory_space<vmem>>, vector<1x4x64xf32>
    %72 = vector.shape_cast %71 : vector<1x4x64xf32> to vector<4x64xf32>
    %73 = vector.shape_cast %70 : vector<4x64xf32> to vector<1x4x64xf32>
    tpu.vector_store %arg3[%c0_20, %c0_21, %c0_22], %73 {strides = array<i32>} : memref<3x8x64xf32, #tpu.memory_space<vmem>>, vector<1x4x64xf32>,
    %c1 = arith.constant 1 : index
    %c0_23 = arith.constant 0 : index
    %c0_24 = arith.constant 0 : index
    %74 = vector.load %arg2[%c1, %c0_23, %c0_24] : memref<3x8x64xf32, #tpu.memory_space<vmem>>, vector<1x8x64xf32>
    %75 = vector.shape_cast %74 : vector<1x8x64xf32> to vector<8x64xf32>
    %76 = arith.negf %75 : vector<8x64xf32>
    %77 = math.exp %76 : vector<8x64xf32>
    %cst_25 = arith.constant 1.000000e+00 : f32
    %78 = vector.broadcast %cst_25 : f32 to vector<8x64xf32>
    %79 = arith.addf %78, %77 : vector<8x64xf32>
    %80 = arith.divf %78, %79 : vector<8x64xf32>
    %c1_26 = arith.constant 1 : index
    %c0_27 = arith.constant 0 : index
    %c0_28 = arith.constant 0 : index
    %81 = vector.load %arg3[%c1_26, %c0_27, %c0_28] : memref<3x8x64xf32, #tpu.memory_space<vmem>>, vector<1x8x64xf32>
    %82 = vector.shape_cast %81 : vector<1x8x64xf32> to vector<8x64xf32>
    %83 = vector.shape_cast %80 : vector<8x64xf32> to vector<1x8x64xf32>
    tpu.vector_store %arg3[%c1_26, %c0_27, %c0_28], %83 {strides = array<i32>} : memref<3x8x64xf32, #tpu.memory_space<vmem>>, vector<1x8x64xf32>,
    %84 = vector.extract_strided_slice %75 {offsets = [0, 0], sizes = [4, 64], strides = [1, 1]} : vector<8x64xf32> to vector<4x64xf32>
    %c2_i32_29 = arith.constant 2 : i32
    %85 = vector.broadcast %c2_i32_29 : i32 to vector<4x1xi32>
    %86 = arith.cmpi slt, %21, %85 : vector<4x1xi32>
    %87 = vector.extract_strided_slice %80 {offsets = [0, 0], sizes = [4, 64], strides = [1, 1]} : vector<8x64xf32> to vector<4x64xf32>
    %88 = math.exp %84 : vector<4x64xf32>
    %89 = vector.shape_cast %86 : vector<4x1xi1> to vector<4x1xi1>
    %90 = vector.broadcast %89 : vector<4x1xi1> to vector<4x64xi1>
    %91 = arith.select %90, %87, %88 : vector<4x64xi1>, vector<4x64xf32>
    %c0_i32_30 = arith.constant 0 : i32
    %92 = vector.broadcast %c0_i32_30 : i32 to vector<4x1xi32>
    %93 = arith.cmpi eq, %21, %92 : vector<4x1xi32>
    %c1_i32_31 = arith.constant 1 : i32
    %94 = vector.broadcast %c1_i32_31 : i32 to vector<4x1xi32>
    %95 = arith.cmpi eq, %21, %94 : vector<4x1xi32>
    %c2_i32_32 = arith.constant 2 : i32
    %96 = vector.broadcast %c2_i32_32 : i32 to vector<4x1xi32>
    %97 = arith.cmpi eq, %21, %96 : vector<4x1xi32>
    %cst_33 = arith.constant 1.600000e+01 : f32
    %cst_34 = arith.constant 3.000000e+01 : f32
    %98 = vector.broadcast %cst_33 : f32 to vector<4x1xf32>
    %99 = vector.broadcast %cst_34 : f32 to vector<4x1xf32>
    %100 = arith.select %97, %98, %99 : vector<4x1xi1>, vector<4x1xf32>
    %cst_35 = arith.constant 8.39999961 : f32
    %101 = vector.broadcast %cst_35 : f32 to vector<4x1xf32>
    %102 = arith.select %95, %101, %100 : vector<4x1xi1>, vector<4x1xf32>
    %cst_36 = arith.constant 8.39999961 : f32
    %103 = vector.broadcast %cst_36 : f32 to vector<4x1xf32>
    %104 = arith.select %93, %103, %102 : vector<4x1xi1>, vector<4x1xf32>
    %105 = vector.broadcast %104 : vector<4x1xf32> to vector<4x64xf32>
    %106 = arith.mulf %91, %105 : vector<4x64xf32>
    %107 = arith.addf %106, %36 : vector<4x64xf32>
    %c1_37 = arith.constant 1 : index
    %c0_38 = arith.constant 0 : index
    %c0_39 = arith.constant 0 : index
    %108 = vector.load %arg3[%c1_37, %c0_38, %c0_39] : memref<3x8x64xf32, #tpu.memory_space<vmem>>, vector<1x4x64xf32>
    %109 = vector.shape_cast %108 : vector<1x4x64xf32> to vector<4x64xf32>
    %110 = vector.shape_cast %107 : vector<4x64xf32> to vector<1x4x64xf32>
    tpu.vector_store %arg3[%c1_37, %c0_38, %c0_39], %110 {strides = array<i32>} : memref<3x8x64xf32, #tpu.memory_space<vmem>>, vector<1x4x64xf32>,
    %c2 = arith.constant 2 : index
    %c0_40 = arith.constant 0 : index
    %c0_41 = arith.constant 0 : index
    %111 = vector.load %arg2[%c2, %c0_40, %c0_41] : memref<3x8x64xf32, #tpu.memory_space<vmem>>, vector<1x8x64xf32>
    %112 = vector.shape_cast %111 : vector<1x8x64xf32> to vector<8x64xf32>
    %113 = arith.negf %112 : vector<8x64xf32>
    %114 = math.exp %113 : vector<8x64xf32>
    %cst_42 = arith.constant 1.000000e+00 : f32
    %115 = vector.broadcast %cst_42 : f32 to vector<8x64xf32>
    %116 = arith.addf %115, %114 : vector<8x64xf32>
    %117 = arith.divf %115, %116 : vector<8x64xf32>
    %c2_43 = arith.constant 2 : index
    %c0_44 = arith.constant 0 : index
    %c0_45 = arith.constant 0 : index
    %118 = vector.load %arg3[%c2_43, %c0_44, %c0_45] : memref<3x8x64xf32, #tpu.memory_space<vmem>>, vector<1x8x64xf32>
    %119 = vector.shape_cast %118 : vector<1x8x64xf32> to vector<8x64xf32>
    %120 = vector.shape_cast %117 : vector<8x64xf32> to vector<1x8x64xf32>
    tpu.vector_store %arg3[%c2_43, %c0_44, %c0_45], %120 {strides = array<i32>} : memref<3x8x64xf32, #tpu.memory_space<vmem>>, vector<1x8x64xf32>,
    %121 = vector.extract_strided_slice %112 {offsets = [0, 0], sizes = [4, 64], strides = [1, 1]} : vector<8x64xf32> to vector<4x64xf32>
    %c2_i32_46 = arith.constant 2 : i32
    %122 = vector.broadcast %c2_i32_46 : i32 to vector<4x1xi32>
    %123 = arith.cmpi slt, %21, %122 : vector<4x1xi32>
    %124 = vector.extract_strided_slice %117 {offsets = [0, 0], sizes = [4, 64], strides = [1, 1]} : vector<8x64xf32> to vector<4x64xf32>
    %125 = math.exp %121 : vector<4x64xf32>
    %126 = vector.shape_cast %123 : vector<4x1xi1> to vector<4x1xi1>
    %127 = vector.broadcast %126 : vector<4x1xi1> to vector<4x64xi1>
    %128 = arith.select %127, %124, %125 : vector<4x64xi1>, vector<4x64xf32>
    %c0_i32_47 = arith.constant 0 : i32
    %129 = vector.broadcast %c0_i32_47 : i32 to vector<4x1xi32>
    %130 = arith.cmpi eq, %21, %129 : vector<4x1xi32>
    %c1_i32_48 = arith.constant 1 : i32
    %131 = vector.broadcast %c1_i32_48 : i32 to vector<4x1xi32>
    %132 = arith.cmpi eq, %21, %131 : vector<4x1xi32>
    %c2_i32_49 = arith.constant 2 : i32
    %133 = vector.broadcast %c2_i32_49 : i32 to vector<4x1xi32>
    %134 = arith.cmpi eq, %21, %133 : vector<4x1xi32>
    %cst_50 = arith.constant 3.300000e+01 : f32
    %cst_51 = arith.constant 2.300000e+01 : f32
    %135 = vector.broadcast %cst_50 : f32 to vector<4x1xf32>
    %136 = vector.broadcast %cst_51 : f32 to vector<4x1xf32>
    %137 = arith.select %134, %135, %136 : vector<4x1xi1>, vector<4x1xf32>
    %cst_52 = arith.constant 8.39999961 : f32
    %138 = vector.broadcast %cst_52 : f32 to vector<4x1xf32>
    %139 = arith.select %132, %138, %137 : vector<4x1xi1>, vector<4x1xf32>
    %cst_53 = arith.constant 8.39999961 : f32
    %140 = vector.broadcast %cst_53 : f32 to vector<4x1xf32>
    %141 = arith.select %130, %140, %139 : vector<4x1xi1>, vector<4x1xf32>
    %142 = vector.broadcast %141 : vector<4x1xf32> to vector<4x64xf32>
    %143 = arith.mulf %128, %142 : vector<4x64xf32>
    %144 = arith.addf %143, %36 : vector<4x64xf32>
    %c2_54 = arith.constant 2 : index
    %c0_55 = arith.constant 0 : index
    %c0_56 = arith.constant 0 : index
    %145 = vector.load %arg3[%c2_54, %c0_55, %c0_56] : memref<3x8x64xf32, #tpu.memory_space<vmem>>, vector<1x4x64xf32>
    %146 = vector.shape_cast %145 : vector<1x4x64xf32> to vector<4x64xf32>
    %147 = vector.shape_cast %144 : vector<4x64xf32> to vector<1x4x64xf32>
    tpu.vector_store %arg3[%c2_54, %c0_55, %c0_56], %147 {strides = array<i32>} : memref<3x8x64xf32, #tpu.memory_space<vmem>>, vector<1x4x64xf32>,
    return
  }
  func.func @transform_0(%arg0: i32, %arg1: i32) -> (i32, i32, i32) {
    %c0_i32 = arith.constant 0 : i32
    %c0_i32_0 = arith.constant 0 : i32
    return %arg0, %c0_i32, %arg1 : i32, i32, i32
  }
  func.func @transform_1(%arg0: i32, %arg1: i32) -> (i32, i32, i32) {
    %c0_i32 = arith.constant 0 : i32
    %c0_i32_0 = arith.constant 0 : i32
    return %arg0, %c0_i32, %arg1 : i32, i32, i32
  }
}

</mosaic_0001>

<llo_original>
// kernel: tpu_custom_call.1
$region0: #{tpu_custom_call.1}
  #allocation0 [shape = 'u32[]', space=smem, size = 0x4, offset = 0x4, fixed_abs, tag = 'smem constant byte address 0x4 - core index']
  #allocation1 [shape = 'u32[144,128]{1,0:T(1,128)}', space=vmem, size = 0x12000, scoped, tag = 'internal scratch']
  %s0 = inlined_call_operand.hbm [shape: f32[6,8,64], index: 0, kind: input, shape index: {}]
  %s1 = inlined_call_operand.hbm [shape: f32[6,8,64], index: 1, kind: output, shape index: {}]
  %s2 = sld [smem:[#allocation0]]
  $region41: #{tpu_custom_call.1} parent=0
    _
  %s4 = ssub.s32 1, %s2
  %s5 = scalar_select 0, %s4, %s2
  $region1: #{tpu_custom_call.1} parent=0
    #allocation2 [shape = 'u8[24576]{0}', space=vmem, size = 0x6000, scoped, tag = 'input window, operand 0']
    #allocation3 [shape = 's32[2]{0}', space=sflag, size = 0x8, scoped, tag = 'scoped memory for tpu_custom_call.1']
    #allocation4 [shape = 's32[2]{0}', space=sflag, size = 0x8, scoped, tag = 'scoped memory for tpu_custom_call.1']
    #allocation5 [shape = 'u8[24576]{0}', space=vmem, size = 0x6000, scoped, tag = 'output window, operand 0']
    %6 = vsyncpa [#allocation3], 0
    %s7 = scalar_lea.sflag [#allocation3], 1
    %8 = vsyncpa %s7, 0
    %9 = vsyncpa [#allocation4], 0
    %s10 = scalar_lea.sflag [#allocation4], 1
    %11 = vsyncpa %s10, 0
    loop: start=0, step=1, limit=4
    $region2: #{tpu_custom_call.1} parent=1 // loop_pre_header
      _
    $region3: #{tpu_custom_call.1} parent=1 // loop_header
      %s13 = sphi 0, %s17
      %p14 = scmp.ge.s32.totalorder %s13, 4
      %s20 = sphi 0, %s32
      %s21 = sphi 0, %s28
      %s22 = sphi 0, %s20
      %s23 = sphi 0, %s21
      %s24 = sphi 0, %s22
      %s25 = sphi 0, %s23
      %s37 = sphi 0, %s39
      %s40 = sphi 0, %s37
      %s41 = sphi 0, %s40
      %s57 = sphi 0, %s41
      %s65 = sphi 0, %s67
      %s68 = sphi 0, %s65
      %s69 = sphi 0, %s68
      %s85 = sphi 0, %s69
    $region4: #{tpu_custom_call.1} parent=1 // loop_header_branch
      %16 = sbr.rel (%p14) target = $region8
    $region5: #{tpu_custom_call.1} parent=1 // loop_body
      %s18 = ssub.s32 %s13, 1
      %s19 = ssub.s32 %s13, 2
      %s26 = sadd.s32 1, %s21
      %p27 = scmp.ge.s32.totalorder %s26, 1
      %s28 = scalar_select %p27, 0, %s26
      %s29 = sadd.s32 1, %s20
      %s30 = scalar_select %p27, %s29, %s20
      %p31 = scmp.ge.s32.totalorder %s30, 2
      %s32 = scalar_select %p31, 0, %s30
      %s33 = ssub.s32 %s20, %s32
      %s34 = ssub.s32 %s21, %s28
      %s35 = sor.u32 %s33, %s34
      %p36 = scmp.eq.s32.totalorder %s35, 0
      %s38 = sadd.s32 %s37, 1
      %s39 = scalar_select %p36, %s37, %s38
      %p42 = pneg %p36
      %p43 = scmp.eq.s32.totalorder %s13, 1
      %p44 = por %p42, %p43
      %p45 = scmp.ne.s32.totalorder %s37, %s40
      %p46 = scmp.eq.s32.totalorder %s13, 0
      %p47 = por %p45, %p46
      %p48 = scmp.ne.s32.totalorder %s37, %s40
      %p49 = scmp.eq.s32.totalorder %s18, 1
      %p50 = por %p48, %p49
      %p51 = scmp.ne.s32.totalorder %s40, %s41
      %p52 = scmp.eq.s32.totalorder %s18, 0
      %p53 = por %p51, %p52
      %p54 = scmp.ne.s32.totalorder %s40, %s41
      %p55 = scmp.eq.s32.totalorder %s19, 1
      %p56 = por %p54, %p55
      %p58 = scmp.ne.s32.totalorder %s41, %s57
      %p59 = scmp.eq.s32.totalorder %s19, 0
      %p60 = por %p58, %p59
      %s61 = ssub.s32 %s20, %s32
      %s62 = ssub.s32 %s21, %s28
      %s63 = sor.u32 %s61, %s62
      %p64 = scmp.eq.s32.totalorder %s63, 0
      %s66 = sadd.s32 %s65, 1
      %s67 = scalar_select %p64, %s65, %s66
      %p70 = pneg %p64
      %p71 = scmp.eq.s32.totalorder %s13, 1
      %p72 = por %p70, %p71
      %p73 = scmp.ne.s32.totalorder %s65, %s68
      %p74 = scmp.eq.s32.totalorder %s13, 0
      %p75 = por %p73, %p74
      %p76 = scmp.ne.s32.totalorder %s65, %s68
      %p77 = scmp.eq.s32.totalorder %s18, 1
      %p78 = por %p76, %p77
      %p79 = scmp.ne.s32.totalorder %s68, %s69
      %p80 = scmp.eq.s32.totalorder %s18, 0
      %p81 = por %p79, %p80
      %p82 = scmp.ne.s32.totalorder %s68, %s69
      %p83 = scmp.eq.s32.totalorder %s19, 1
      %p84 = por %p82, %p83
      %p86 = scmp.ne.s32.totalorder %s69, %s85
      %p87 = scmp.eq.s32.totalorder %s19, 0
      %p88 = por %p86, %p87
      %p89 = scmp.le.s32.totalorder 1, %s13
      %p90 = scmp.lt.s32.totalorder %s13, 3
      %p91 = pnand %p89, %p90
      %p92 = pneg %p91
      // Predicated region
      $region9: #{tpu_custom_call.1} parent=5 // pred_check
        _
      $region10: #{tpu_custom_call.1} parent=5 // pred_check_branch
        %94 = sbr.rel (%p91) target = $region12
      $region11: #{tpu_custom_call.1} parent=5 // pred_region
        %s95 = ssub.s32 %s13, 1
      $region12: #{tpu_custom_call.1} parent=5 // pred_fallthru
        _
      %p96 = scmp.lt.s32.totalorder %s13, 2
      // Predicated region
      $region13: #{tpu_custom_call.1} parent=5 // pred_check
        %p97 = pneg %p96
      $region14: #{tpu_custom_call.1} parent=5 // pred_check_branch
        %99 = sbr.rel (%p97) target = $region16
      $region15: #{tpu_custom_call.1} parent=5 // pred_region
        // Predicated region
        $region17: #{tpu_custom_call.1} parent=15 // pred_check
          %p100 = pneg %p47
        $region18: #{tpu_custom_call.1} parent=15 // pred_check_branch
          %102 = sbr.rel (%p100) target = $region20
        $region19: #{tpu_custom_call.1} parent=15 // pred_region
          %s103 = sand.u32 %s37, 1
          %s104 = scalar_lea.sflag [#allocation3], %s103
          %s105 = sand.u32 %s37, 1
          %s106 = smul.addr %s105, 24
          %s107 = scalar_lea.vmem [#allocation2], %s106
          %s108 = smul.u32 3, %s20
          %s110 = ssub.s32 384, 384
          %111 = vsyncadd %s104, %s110
          %s112 = sadd.s32 %s21, %s108
          %s113 = smul.addr %s112, 128
          %s114 = scalar_lea.hbm %s0, %s113
          %s115 = sshll.u32 %s107, 4
          %s116 = int_to_ptr.vmem [resolvable:$true] %s115
          %121 = dma.hbm_to_vmem [thread:$0]  %s114, 384, %s116, %s104, 128, 128, 8
        $region20: #{tpu_custom_call.1} parent=15 // pred_fallthru
          _
      $region16: #{tpu_custom_call.1} parent=5 // pred_fallthru
        _
      %p122 = scmp.le.s32.totalorder 1, %s13
      %p123 = scmp.lt.s32.totalorder %s13, 3
      %p124 = pnand %p122, %p123
      %p125 = pneg %p124
      // Predicated region
      $region21: #{tpu_custom_call.1} parent=5 // pred_check
        _
      $region22: #{tpu_custom_call.1} parent=5 // pred_check_branch
        %127 = sbr.rel (%p124) target = $region24
      $region23: #{tpu_custom_call.1} parent=5 // pred_region
        %s128 = ssub.s32 %s13, 1
        %s129 = sand.u32 %s40, 1
        %s130 = scalar_lea.sflag [#allocation3], %s129
        %s131 = sand.u32 %s40, 1
        %s132 = smul.addr %s131, 24
        %s133 = scalar_lea.vmem [#allocation2], %s132
        // Predicated region
        $region25: #{tpu_custom_call.1} parent=23 // pred_check
          %p134 = pneg %p53
        $region26: #{tpu_custom_call.1} parent=23 // pred_check_branch
          %136 = sbr.rel (%p134) target = $region28
        $region27: #{tpu_custom_call.1} parent=23 // pred_region
          %137 = dma.done %s130, 384
        $region28: #{tpu_custom_call.1} parent=23 // pred_fallthru
          _
        %s138 = sand.u32 %s40, 1
        %s139 = scalar_lea.sflag [#allocation3], %s138
        %s140 = sand.u32 %s40, 1
        %s141 = smul.addr %s140, 24
        %s142 = scalar_lea.vmem [#allocation2], %s141
        %p143 = pneg %p53
        %p144 = pneg %p50
        %p145 = pneg %p81
        %p146 = pneg %p78
        %s147 = sand.u32 %s68, 1
        %s148 = scalar_lea.sflag [#allocation4], %s147
        %s149 = sand.u32 %s68, 1
        %s150 = smul.addr %s149, 24
        %s151 = scalar_lea.vmem [#allocation5], %s150
        %s152 = smul.u32 3, %s22
        %s153 = smul.u32 3, %s22
        %s154 = smul.u32 %s23, 64
        %v155 = vlaneseq
        %v156 = vand.u32 %v155, 127
        %v157 = vstv %s154
        %v158 = vadd.s32 %v157, %v156
        %v159 = vcvt.s32.f32 %v158
        %v160 = vadd.f32 %v159, 0.5
        %v161 = vmul.f32 %v160, 0.125
        %v162 = vfloor.f32 %v161
        %v163 = vmul.f32 %v162, 8.0
        %v164 = vsub.f32 %v159, %v163
        %v165 = vmul.f32 %v164, 8.0
        %v166 = vadd.f32 %v165, -0.2
        %v167 = vadd.f32 %v163, -0.2
        %v168 = vlaneseq
        %v169 = vshrl.u32 %v168, 7
        %vm170 = vcmp.eq.s32.totalorder %v169, 0
        %vm171 = vcmp.eq.s32.totalorder %v169, 1
        %v172 = vsel %vm171, 1, 0
        %vm173 = vcmp.eq.s32.totalorder %v172, 1
        %v174 = vsel %vm173, %v167, 0.0
        %v175 = vsel %vm170, 1, 0
        %vm176 = vcmp.eq.s32.totalorder %v175, 1
        %v177 = vsel %vm176, %v166, %v174
        %v178 = vld [vmem:[%s133] sm:$0xff]
        %v179 = vxor.u32 %v178, 2147483648
        %v180 = vmul.f32 %v179, 1.442695
        %v181 = vpow.pop %v180
        %v182 = vadd.f32 %v181, 1.0
        %v183 = vrcp.pop %v182
        %v184 = vmul.f32 1.0, %v183
        %vm185 = vcmask 523264
        %186 = vst.msk [vmem:[%s151] sm:$0xff] %vm185, %v184
        %vm187 = vcmp.lt.s32.totalorder %v169, 2
        %v188 = vmul.f32 %v178, 1.442695
        %v189 = vpow.pop %v188
        %v190 = vsel %vm187, 1, 0
        %vm191 = vcmp.eq.s32.totalorder %v190, 1
        %v192 = vsel %vm191, %v184, %v189
        %vm193 = vcmp.eq.s32.totalorder %v169, 2
        %v194 = vsel %vm193, 10.0, 13.0
        %v195 = vsel %vm171, 8.4, %v194
        %v196 = vsel %vm170, 8.4, %v195
        %v197 = vmul.f32 %v192, %v196
        %v198 = vadd.f32 %v197, %v177
        %vm199 = vcmask 519168
        %200 = vst.msk [vmem:[%s151] sm:$0xf] %vm199, %v198
        %s201 = scalar_lea.vmem %s133, 8 [#allocation2]
        %v202 = vld [vmem:[%s201] sm:$0xff]
        %v203 = vxor.u32 %v202, 2147483648
        %v204 = vmul.f32 %v203, 1.442695
        %v205 = vpow.pop %v204
        %v206 = vadd.f32 %v205, 1.0
        %v207 = vrcp.pop %v206
        %v208 = vmul.f32 1.0, %v207
        %s209 = scalar_lea.vmem %s151, 8 [#allocation5]
        %210 = vst.msk [vmem:[%s209] sm:$0xff] %vm185, %v208
        %v211 = vmul.f32 %v202, 1.442695
        %v212 = vpow.pop %v211
        %v213 = vsel %vm191, %v208, %v212
        %v214 = vsel %vm193, 16.0, 30.0
        %v215 = vsel %vm171, 8.4, %v214
        %v216 = vsel %vm170, 8.4, %v215
        %v217 = vmul.f32 %v213, %v216
        %v218 = vadd.f32 %v217, %v177
        %219 = vst.msk [vmem:[%s209] sm:$0xf] %vm199, %v218
        %s220 = scalar_lea.vmem %s133, 16 [#allocation2]
        %v221 = vld [vmem:[%s220] sm:$0xff]
        %v222 = vxor.u32 %v221, 2147483648
        %v223 = vmul.f32 %v222, 1.442695
        %v224 = vpow.pop %v223
        %v225 = vadd.f32 %v224, 1.0
        %v226 = vrcp.pop %v225
        %v227 = vmul.f32 1.0, %v226
        %s228 = scalar_lea.vmem %s151, 16 [#allocation5]
        %229 = vst.msk [vmem:[%s228] sm:$0xff] %vm185, %v227
        %v230 = vmul.f32 %v221, 1.442695
        %v231 = vpow.pop %v230
        %v232 = vsel %vm191, %v227, %v231
        %v233 = vsel %vm193, 33.0, 23.0
        %v234 = vsel %vm171, 8.4, %v233
        %v235 = vsel %vm170, 8.4, %v234
        %v236 = vmul.f32 %v232, %v235
        %v237 = vadd.f32 %v236, %v177
        %238 = vst.msk [vmem:[%s228] sm:$0xf] %vm199, %v237
        %s239 = sand.u32 %s68, 1
        %s240 = scalar_lea.sflag [#allocation4], %s239
        %s241 = sand.u32 %s68, 1
        %s242 = smul.addr %s241, 24
        %s243 = scalar_lea.vmem [#allocation5], %s242
        // Predicated region
        $region29: #{tpu_custom_call.1} parent=23 // pred_check
          %p244 = pneg %p78
        $region30: #{tpu_custom_call.1} parent=23 // pred_check_branch
          %246 = sbr.rel (%p244) target = $region32
        $region31: #{tpu_custom_call.1} parent=23 // pred_region
          %s247 = smul.u32 3, %s22
          %s249 = ssub.s32 384, 384
          %250 = vsyncadd %s240, %s249
          %s251 = sadd.s32 %s23, %s247
          %s252 = smul.addr %s251, 128
          %s253 = scalar_lea.hbm %s1, %s252
          %s254 = sshll.u32 %s243, 4
          %s255 = int_to_ptr.vmem [resolvable:$true] %s254
          %260 = dma.vmem_to_hbm [thread:$0]  %s255, 384, %s253, %s240, 128, 128, 8
        $region32: #{tpu_custom_call.1} parent=23 // pred_fallthru
          _
      $region24: #{tpu_custom_call.1} parent=5 // pred_fallthru
        _
      %p261 = scmp.le.s32.totalorder 2, %s13
      // Predicated region
      $region33: #{tpu_custom_call.1} parent=5 // pred_check
        %p262 = pneg %p261
      $region34: #{tpu_custom_call.1} parent=5 // pred_check_branch
        %264 = sbr.rel (%p262) target = $region36
      $region35: #{tpu_custom_call.1} parent=5 // pred_region
        %s265 = ssub.s32 %s13, 2
        // Predicated region
        $region37: #{tpu_custom_call.1} parent=35 // pred_check
          %p266 = pneg %p84
        $region38: #{tpu_custom_call.1} parent=35 // pred_check_branch
          %268 = sbr.rel (%p266) target = $region40
        $region39: #{tpu_custom_call.1} parent=35 // pred_region
          %s269 = sand.u32 %s69, 1
          %s270 = scalar_lea.sflag [#allocation4], %s269
          %s271 = sand.u32 %s69, 1
          %s272 = smul.addr %s271, 24
          %s273 = scalar_lea.vmem [#allocation5], %s272
          %274 = dma.done %s270, 384
        $region40: #{tpu_custom_call.1} parent=35 // pred_fallthru
          _
      $region36: #{tpu_custom_call.1} parent=5 // pred_fallthru
        _
    $region6: #{tpu_custom_call.1} parent=1 // loop_footer
      %s17 = sadd.s32 1, %s13
    $region7: #{tpu_custom_call.1} parent=1 // loop_footer_branch
      %12 = sbr.rel target = $region3
    $region8: #{tpu_custom_call.1} parent=1 // loop_exit
      _
    %275 = vsyncpa [#allocation3], 1
    %s276 = scalar_lea.sflag [#allocation3], 1
    %277 = vsyncpa %s276, 1
    %278 = vsyncpa [#allocation4], 1
    %s279 = scalar_lea.sflag [#allocation4], 1
    %280 = vsyncpa %s279, 1

</llo_original>
